<compile_context>
chip_gen: v7x
topology: tpu7x:2x2x1
jax: 0.10.0
libtpu: 0.0.40
codegen_flags: <defaults>
</compile_context>

<pallas_src>
import functools

import jax
import jax.numpy as jnp
from jax.experimental import pallas as pl
from jax.experimental.pallas import tpu as pltpu

LN2 = 0.6931471805599453  # ln(2): 2**x == exp(x * ln2)


def _round_up(x, m):
    return ((x + m - 1) // m) * m


def _choose_tb(n_rows, lane_width, g, c):
    """Packed-row tile size, with lane-padding-aware VMEM accounting."""
    if n_rows <= 8:
        return max(1, n_rows)

    def lp_bytes(lanes):  # f32 bytes per row, lane-padded to 128 in VMEM
        return _round_up(lanes, 128) * 4

    # xs + ys double-buffered inputs, plus one-hot / center_exp / 2 f32 temps / group sums.
    per_row = (2 * lp_bytes(lane_width) + 2 * lp_bytes(g)
               + lp_bytes(g * c) + 3 * lp_bytes(lane_width) + 2 * lp_bytes(g))
    budget = 10 << 20                      # well under v5e's 16 MiB scoped-VMEM default
    tb = budget // max(per_row, 1)
    # ~1-2 MiB of xs per grid step is plenty to hide the ~0.35us/step pipeline overhead.
    tb = min(tb, (2 << 20) // (lane_width * 4), 4096)
    # Keep >= 4 grid steps for big batches (v7x megacore + pipelining).
    if n_rows >= 1024:
        tb = min(tb, _round_up(pl.cdiv(n_rows, 4), 8))
    tb = max(8, (tb // 8) * 8)
    tb = min(tb, (n_rows // 8) * 8)        # never larger than the array (no all-OOB blocks)
    return tb


def _closs_kernel(xs_ref, ys_ref, pc_ref, sm_ref, out_ref, *, tb, G, C, n_valid):
    k = pl.program_id(0)
    last = pl.num_programs(0) - 1

    # Packed one-hot: onehot[r, g*C + c] = (ys[r, g] == c).  Built with G cheap
    # compare+add passes (no lane gather needed).
    ys = ys_ref[...]                                                    # (tb, G) int32
    col = jax.lax.broadcasted_iota(jnp.int32, (tb, G * C), 1)
    onehot = jnp.zeros((tb, G * C), jnp.float32)
    for g in range(G):
        onehot = onehot + (col == (ys[:, g:g + 1] + g * C)).astype(jnp.float32)

    # Gather via MXU against the block-diagonal packed center -> (tb, G*F), same
    # lane layout as the packed xs tile.
    center_exp = jnp.dot(onehot, pc_ref[...], preferred_element_type=jnp.float32)

    # 2 ** (xs - center), full 128-lane fill.
    d = xs_ref[...] - center_exp                                        # (tb, G*F)
    p = jnp.exp(d * jnp.float32(LN2))                                   # 2**d (exp2 == exp(x*ln2))

    # Per-group feature sums via a tiny segment-sum matmul, then one dense sqrt pass.
    gsum = jnp.dot(p, sm_ref[...], preferred_element_type=jnp.float32)  # (tb, G)
    sq = jnp.sqrt(gsum)                                                 # (tb, G)

    def _store(vals):
        t = jnp.sum(vals, axis=1, keepdims=True)                        # (tb, 1)
        t = jnp.sum(t, axis=0, keepdims=True)                           # (1, 1)
        out_ref[...] = jnp.broadcast_to(t[:, :, None], (1, 1, 128))     # lane-dense store

    # Only the last tile can contain padded / out-of-bounds rows; interior tiles skip
    # the iota + compare + select entirely.
    @pl.when(k == last)
    def _():
        row = (k * tb + jax.lax.broadcasted_iota(jnp.int32, (tb, G), 0)) * G \
              + jax.lax.broadcasted_iota(jnp.int32, (tb, G), 1)
        _store(jnp.where(row < n_valid, sq, jnp.float32(0.0)))          # select: garbage -> 0

    @pl.when(k != last)
    def _():
        _store(sq)


def closs_forward(xs, ys, center, *, tb=None):
    """xs: (N, F) f32, ys: (N,) int, center: (C, F) f32 -> scalar f32."""
    n, f = xs.shape
    c, f2 = center.shape
    assert f == f2 and n >= 1

    xs = xs.astype(jnp.float32)
    ys = ys.astype(jnp.int32)
    center = center.astype(jnp.float32)

    # Lane-packing factor: G consecutive rows share one 128-lane register row.
    if f <= 128 and 128 % f == 0:
        g = 128 // f
    else:
        g = 1  # TODO(synk): feature dims that don't divide 128 run unpacked (correct, lower lane fill).

    n_pad = _round_up(n, g)
    if n_pad != n:
        # Rare path (< g pad rows); padded rows are masked to 0 in-kernel.
        xs = jnp.pad(xs, ((0, n_pad - n), (0, 0)))
        ys = jnp.pad(ys, ((0, n_pad - n),))
    rows = n_pad // g
    lw = g * f                                           # packed lane width (128 when packed)

    xs_p = xs.reshape(rows, lw)                          # free reshape of contiguous data
    ys_p = ys.reshape(rows, g)

    # Block-diagonal packed center: row g*C + c holds center[c] in lanes [g*F, (g+1)*F).
    # TODO(synk): for very large class counts this resident (G*C, G*F) tile would need a C grid axis.
    pcenter = jnp.kron(jnp.eye(g, dtype=jnp.float32), center)           # (g*c, lw)
    # Segment-sum matrix: smat[j, q] = 1 iff lane j belongs to group q.
    smat = (jnp.arange(lw)[:, None] // f == jnp.arange(g)[None, :]).astype(jnp.float32)

    if tb is None:
        tb = _choose_tb(rows, lw, g, c)
    tb = min(tb, rows)
    if rows > 8:
        assert tb % 8 == 0, "explicit tb must be a multiple of 8"
    n_tiles = pl.cdiv(rows, tb)

    kernel = functools.partial(_closs_kernel, tb=tb, G=g, C=c, n_valid=n)

    parts = pl.pallas_call(
        kernel,
        out_shape=jax.ShapeDtypeStruct((n_tiles, 1, 128), jnp.float32),
        grid_spec=pltpu.PrefetchScalarGridSpec(
            num_scalar_prefetch=0,
            grid=(n_tiles,),
            in_specs=[
                pl.BlockSpec((tb, lw), lambda i: (i, 0)),       # packed xs tile
                pl.BlockSpec((tb, g), lambda i: (i, 0)),        # packed labels tile
                pl.BlockSpec((g * c, lw), lambda i: (0, 0)),    # packed center: VMEM-resident
                pl.BlockSpec((lw, g), lambda i: (0, 0)),        # segment-sum matrix: resident
            ],
            out_specs=pl.BlockSpec((1, 1, 128), lambda i: (i, 0, 0)),   # per-tile partial sum
        ),
        compiler_params=pltpu.CompilerParams(
            # Each tile writes its own output block -> fully parallel batch axis
            # (lets v7x's two TensorCores split the grid; neutral on v5e/v6e).
            dimension_semantics=("parallel",),
        ),
    )(xs_p, ys_p, pcenter, smat)

    return jnp.sum(parts[:, 0, 0])


def closs_reference(xs, ys, center):
    center_exp = center[ys.astype(jnp.int32)]
    p = jnp.exp2(xs.astype(jnp.float32) - center_exp)
    return jnp.sum(jnp.sqrt(jnp.sum(p, axis=1)))


if __name__ == "__main__":
    cls_num, feat_num, batch = 10, 32, 16

    key = jax.random.PRNGKey(0)
    k_center, k_xs, k_ys = jax.random.split(key, 3)

    # Deterministic "parameter" init (stands in for nn.Parameter(torch.randn(...))).
    center = jax.random.normal(k_center, (cls_num, feat_num), dtype=jnp.float32)

    # Case 1: small batch, divisible by the packing factor (copy-free path).
    xs = jax.random.normal(k_xs, (batch, feat_num), dtype=jnp.float32)
    ys = jax.random.randint(k_ys, (batch,), 0, cls_num, dtype=jnp.int32)
    out = jax.block_until_ready(closs_forward(xs, ys, center))
    ref = closs_reference(xs, ys, center)
    assert jnp.allclose(out, ref, rtol=1e-5, atol=1e-5), (out, ref)

    # Case 2: batch not divisible by the packing factor (tiny pad + in-kernel mask).
    xs2 = jax.random.normal(k_xs, (batch + 3, feat_num), dtype=jnp.float32)
    ys2 = jax.random.randint(k_ys, (batch + 3,), 0, cls_num, dtype=jnp.int32)
    out2 = jax.block_until_ready(closs_forward(xs2, ys2, center))
    ref2 = closs_reference(xs2, ys2, center)
    assert jnp.allclose(out2, ref2, rtol=1e-5, atol=1e-5), (out2, ref2)

    # Case 3: multi-tile grid with a ragged last block (parallel axis + pl.when tail mask).
    xs3 = jax.random.normal(k_xs, (333, feat_num), dtype=jnp.float32)
    ys3 = jax.random.randint(k_ys, (333,), 0, cls_num, dtype=jnp.int32)
    out3 = jax.block_until_ready(closs_forward(xs3, ys3, center, tb=16))
    ref3 = closs_reference(xs3, ys3, center)
    assert jnp.allclose(out3, ref3, rtol=1e-5, atol=1e-5), (out3, ref3)

    print("KERNEL_OK")
</pallas_src>

<mosaic_0001>
module attributes {stable_mosaic.version = 11 : i64} {
  func.func @_closs_kernel(%arg0: i32, %arg1: memref<4x128xf32, #tpu.memory_space<vmem>>, %arg2: memref<4x4xi32, #tpu.memory_space<vmem>>, %arg3: memref<40x128xf32, #tpu.memory_space<vmem>>, %arg4: memref<128x4xf32, #tpu.memory_space<vmem>>, %arg5: memref<1x1x128xf32, #tpu.memory_space<vmem>>) attributes {dimension_semantics = [#tpu.dimension_semantics<parallel>], iteration_bounds = array<i64: 1>, scalar_prefetch = 0 : i64, scratch_operands = 0 : i64, tpu.core_type = #tpu.core_type<tc>, window_params = [{transform_indices = @transform_0, window_bounds = array<i64: 4, 128>}, {transform_indices = @transform_1, window_bounds = array<i64: 4, 4>}, {pipeline_mode = #tpu.pipeline_mode<synchronous>, transform_indices = @transform_2, window_bounds = array<i64: 40, 128>}, {pipeline_mode = #tpu.pipeline_mode<synchronous>, transform_indices = @transform_3, window_bounds = array<i64: 128, 4>}, {transform_indices = @transform_4, window_bounds = array<i64: 1, 1, 128>}]} {
    %c0 = arith.constant 0 : index
    %c0_0 = arith.constant 0 : index
    %0 = vector.load %arg2[%c0, %c0_0] : memref<4x4xi32, #tpu.memory_space<vmem>>, vector<4x4xi32>
    %1 = tpu.iota {dimensions = array<i32: 1>} : vector<4x40xi32>
    %cst = arith.constant 0.000000e+00 : f32
    %2 = vector.broadcast %cst : f32 to vector<4x40xf32>
    %3 = vector.extract_strided_slice %0 {offsets = [0, 0], sizes = [4, 1], strides = [1, 1]} : vector<4x4xi32> to vector<4x1xi32>
    %c0_i32 = arith.constant 0 : i32
    %4 = vector.broadcast %c0_i32 : i32 to vector<4x1xi32>
    %5 = arith.addi %3, %4 : vector<4x1xi32>
    %6 = vector.broadcast %5 : vector<4x1xi32> to vector<4x40xi32>
    %7 = arith.cmpi eq, %1, %6 : vector<4x40xi32>
    %8 = arith.extui %7 : vector<4x40xi1> to vector<4x40xi32>
    %9 = arith.sitofp %8 : vector<4x40xi32> to vector<4x40xf32>
    %10 = arith.addf %2, %9 : vector<4x40xf32>
    %11 = vector.extract_strided_slice %0 {offsets = [0, 1], sizes = [4, 1], strides = [1, 1]} : vector<4x4xi32> to vector<4x1xi32>
    %c10_i32 = arith.constant 10 : i32
    %12 = vector.broadcast %c10_i32 : i32 to vector<4x1xi32>
    %13 = arith.addi %11, %12 : vector<4x1xi32>
    %14 = vector.broadcast %13 : vector<4x1xi32> to vector<4x40xi32>
    %15 = arith.cmpi eq, %1, %14 : vector<4x40xi32>
    %16 = arith.extui %15 : vector<4x40xi1> to vector<4x40xi32>
    %17 = arith.sitofp %16 : vector<4x40xi32> to vector<4x40xf32>
    %18 = arith.addf %10, %17 : vector<4x40xf32>
    %19 = vector.extract_strided_slice %0 {offsets = [0, 2], sizes = [4, 1], strides = [1, 1]} : vector<4x4xi32> to vector<4x1xi32>
    %c20_i32 = arith.constant 20 : i32
    %20 = vector.broadcast %c20_i32 : i32 to vector<4x1xi32>
    %21 = arith.addi %19, %20 : vector<4x1xi32>
    %22 = vector.broadcast %21 : vector<4x1xi32> to vector<4x40xi32>
    %23 = arith.cmpi eq, %1, %22 : vector<4x40xi32>
    %24 = arith.extui %23 : vector<4x40xi1> to vector<4x40xi32>
    %25 = arith.sitofp %24 : vector<4x40xi32> to vector<4x40xf32>
    %26 = arith.addf %18, %25 : vector<4x40xf32>
    %27 = vector.extract_strided_slice %0 {offsets = [0, 3], sizes = [4, 1], strides = [1, 1]} : vector<4x4xi32> to vector<4x1xi32>
    %c30_i32 = arith.constant 30 : i32
    %28 = vector.broadcast %c30_i32 : i32 to vector<4x1xi32>
    %29 = arith.addi %27, %28 : vector<4x1xi32>
    %30 = vector.broadcast %29 : vector<4x1xi32> to vector<4x40xi32>
    %31 = arith.cmpi eq, %1, %30 : vector<4x40xi32>
    %32 = arith.extui %31 : vector<4x40xi1> to vector<4x40xi32>
    %33 = arith.sitofp %32 : vector<4x40xi32> to vector<4x40xf32>
    %34 = arith.addf %26, %33 : vector<4x40xf32>
    %c0_1 = arith.constant 0 : index
    %c0_2 = arith.constant 0 : index
    %35 = vector.load %arg3[%c0_1, %c0_2] : memref<40x128xf32, #tpu.memory_space<vmem>>, vector<40x128xf32>
    %cst_3 = arith.constant dense<0.000000e+00> : vector<4x128xf32>
    %36 = tpu.matmul %34, %35, %cst_3 {dimension_numbers = #tpu.dot_dimension_numbers<[1], [0], [0], [1], [0, 0, 1, 1], [], []>} : vector<4x40xf32>, vector<40x128xf32>, vector<4x128xf32> -> vector<4x128xf32>
    %c0_4 = arith.constant 0 : index
    %c0_5 = arith.constant 0 : index
    %37 = vector.load %arg1[%c0_4, %c0_5] : memref<4x128xf32, #tpu.memory_space<vmem>>, vector<4x128xf32>
    %38 = arith.subf %37, %36 : vector<4x128xf32>
    %cst_6 = arith.constant 0.693147182 : f32
    %39 = vector.broadcast %cst_6 : f32 to vector<4x128xf32>
    %40 = arith.mulf %38, %39 : vector<4x128xf32>
    %41 = math.exp %40 : vector<4x128xf32>
    %c0_7 = arith.constant 0 : index
    %c0_8 = arith.constant 0 : index
    %42 = vector.load %arg4[%c0_7, %c0_8] : memref<128x4xf32, #tpu.memory_space<vmem>>, vector<128x4xf32>
    %cst_9 = arith.constant dense<0.000000e+00> : vector<4x4xf32>
    %43 = tpu.matmul %41, %42, %cst_9 {dimension_numbers = #tpu.dot_dimension_numbers<[1], [0], [0], [1], [0, 0, 1, 1], [], []>} : vector<4x128xf32>, vector<128x4xf32>, vector<4x4xf32> -> vector<4x4xf32>
    %44 = math.sqrt %43 : vector<4x4xf32>
    %c0_i32_10 = arith.constant 0 : i32
    %45 = arith.cmpi eq, %arg0, %c0_i32_10 : i32
    %46 = arith.extui %45 : i1 to i32
    %c0_i32_11 = arith.constant 0 : i32
    %47 = arith.cmpi ne, %46, %c0_i32_11 : i32
    scf.if %47 {
      %c4_i32 = arith.constant 4 : i32
      %51 = arith.muli %arg0, %c4_i32 : i32
      %52 = tpu.iota {dimensions = array<i32: 0>} : vector<4x4xi32>
      %53 = vector.broadcast %51 : i32 to vector<4x4xi32>
      %54 = arith.addi %53, %52 : vector<4x4xi32>
      %c4_i32_14 = arith.constant 4 : i32
      %55 = vector.broadcast %c4_i32_14 : i32 to vector<4x4xi32>
      %56 = arith.muli %54, %55 : vector<4x4xi32>
      %57 = tpu.iota {dimensions = array<i32: 1>} : vector<4x4xi32>
      %58 = arith.addi %56, %57 : vector<4x4xi32>
      %c16_i32 = arith.constant 16 : i32
      %59 = vector.broadcast %c16_i32 : i32 to vector<4x4xi32>
      %60 = arith.cmpi slt, %58, %59 : vector<4x4xi32>
      %cst_15 = arith.constant 0.000000e+00 : f32
      %61 = vector.broadcast %cst_15 : f32 to vector<4x4xf32>
      %62 = arith.select %60, %44, %61 : vector<4x4xi1>, vector<4x4xf32>
      %cst_16 = arith.constant dense<0.000000e+00> : vector<4xf32>
      %63 = vector.multi_reduction <add>, %62, %cst_16 [1] : vector<4x4xf32> to vector<4xf32>
      %64 = vector.shape_cast %63 : vector<4xf32> to vector<4x1xf32>
      %cst_17 = arith.constant dense<0.000000e+00> : vector<1xf32>
      %65 = vector.multi_reduction <add>, %64, %cst_17 [0] : vector<4x1xf32> to vector<1xf32>
      %66 = vector.shape_cast %65 : vector<1xf32> to vector<1x1xf32>
      %67 = vector.shape_cast %66 : vector<1x1xf32> to vector<1x1x1xf32>
      %68 = vector.shape_cast %67 : vector<1x1x1xf32> to vector<1x1x1xf32>
      %69 = vector.broadcast %68 : vector<1x1x1xf32> to vector<1x1x128xf32>
      %c0_18 = arith.constant 0 : index
      %c0_19 = arith.constant 0 : index
      %c0_20 = arith.constant 0 : index
      %70 = vector.load %arg5[%c0_18, %c0_19, %c0_20] : memref<1x1x128xf32, #tpu.memory_space<vmem>>, vector<1x1x128xf32>
      tpu.vector_store %arg5[%c0_18, %c0_19, %c0_20], %69 {strides = array<i32>} : memref<1x1x128xf32, #tpu.memory_space<vmem>>, vector<1x1x128xf32>,
    } else {
    }
    %c0_i32_12 = arith.constant 0 : i32
    %48 = arith.cmpi ne, %arg0, %c0_i32_12 : i32
    %49 = arith.extui %48 : i1 to i32
    %c0_i32_13 = arith.constant 0 : i32
    %50 = arith.cmpi ne, %49, %c0_i32_13 : i32
    scf.if %50 {
      %cst_14 = arith.constant dense<0.000000e+00> : vector<4xf32>
      %51 = vector.multi_reduction <add>, %44, %cst_14 [1] : vector<4x4xf32> to vector<4xf32>
      %52 = vector.shape_cast %51 : vector<4xf32> to vector<4x1xf32>
      %cst_15 = arith.constant dense<0.000000e+00> : vector<1xf32>
      %53 = vector.multi_reduction <add>, %52, %cst_15 [0] : vector<4x1xf32> to vector<1xf32>
      %54 = vector.shape_cast %53 : vector<1xf32> to vector<1x1xf32>
      %55 = vector.shape_cast %54 : vector<1x1xf32> to vector<1x1x1xf32>
      %56 = vector.shape_cast %55 : vector<1x1x1xf32> to vector<1x1x1xf32>
      %57 = vector.broadcast %56 : vector<1x1x1xf32> to vector<1x1x128xf32>
      %c0_16 = arith.constant 0 : index
      %c0_17 = arith.constant 0 : index
      %c0_18 = arith.constant 0 : index
      %58 = vector.load %arg5[%c0_16, %c0_17, %c0_18] : memref<1x1x128xf32, #tpu.memory_space<vmem>>, vector<1x1x128xf32>
      tpu.vector_store %arg5[%c0_16, %c0_17, %c0_18], %57 {strides = array<i32>} : memref<1x1x128xf32, #tpu.memory_space<vmem>>, vector<1x1x128xf32>,
    } else {
    }
    return
  }
  func.func @transform_0(%arg0: i32) -> (i32, i32) {
    %c0_i32 = arith.constant 0 : i32
    %c0_i32_0 = arith.constant 0 : i32
    return %arg0, %c0_i32 : i32, i32
  }
  func.func @transform_1(%arg0: i32) -> (i32, i32) {
    %c0_i32 = arith.constant 0 : i32
    %c0_i32_0 = arith.constant 0 : i32
    return %arg0, %c0_i32 : i32, i32
  }
  func.func @transform_2(%arg0: i32) -> (i32, i32) {
    %c0_i32 = arith.constant 0 : i32
    %c0_i32_0 = arith.constant 0 : i32
    %c0_i32_1 = arith.constant 0 : i32
    return %c0_i32, %c0_i32_0 : i32, i32
  }
  func.func @transform_3(%arg0: i32) -> (i32, i32) {
    %c0_i32 = arith.constant 0 : i32
    %c0_i32_0 = arith.constant 0 : i32
    %c0_i32_1 = arith.constant 0 : i32
    return %c0_i32, %c0_i32_0 : i32, i32
  }
  func.func @transform_4(%arg0: i32) -> (i32, i32, i32) {
    %c0_i32 = arith.constant 0 : i32
    %c0_i32_0 = arith.constant 0 : i32
    %c0_i32_1 = arith.constant 0 : i32
    return %arg0, %c0_i32, %c0_i32_0 : i32, i32, i32
  }
}

</mosaic_0001>

<llo_original>
// kernel: tpu_custom_call.1
$region0: #{tpu_custom_call.1}
  #allocation0 [shape = 'u32[]', space=smem, size = 0x4, offset = 0x4, fixed_abs, tag = 'smem constant byte address 0x4 - core index']
  #allocation1 [shape = 'u32[144,128]{1,0:T(1,128)}', space=vmem, size = 0x12000, scoped, tag = 'internal scratch']
  %s0 = inlined_call_operand.vmem [shape: f32[4,128], index: 0, kind: input, shape index: {}]
  %s1 = inlined_call_operand.vmem [shape: s32[4,4], index: 1, kind: input, shape index: {}]
  %s2 = inlined_call_operand.vmem [shape: f32[40,128], index: 2, kind: input, shape index: {}]
  %s3 = inlined_call_operand.vmem [shape: f32[128,4], index: 3, kind: input, shape index: {}]
  %s4 = inlined_call_operand.hbm [shape: f32[1,1,128], index: 4, kind: output, shape index: {}]
  %s5 = sld [smem:[#allocation0]]
  $region34: #{tpu_custom_call.1} parent=0
    _
  %s7 = ssub.s32 1, %s5
  %s8 = scalar_select 0, %s7, %s5
  $region1: #{tpu_custom_call.1} parent=0
    #allocation2 [shape = 'u8[512]{0}', space=vmem, size = 0x400, scoped, tag = 'output window, operand 0, single buffered']
    #allocation3 [shape = 's32[1]{0}', space=sflag, size = 0x4, scoped, tag = 'scoped memory for tpu_custom_call.1']
    %9 = vsyncpa [#allocation3], 0
    // Predicated region
    $region2: #{tpu_custom_call.1} parent=1 // pred_check
      _
    $region3: #{tpu_custom_call.1} parent=1 // pred_check_branch
      %11 = sbr.rel (0) target = $region5
    $region4: #{tpu_custom_call.1} parent=1 // pred_region
      _
    $region5: #{tpu_custom_call.1} parent=1 // pred_fallthru
      _
    // Predicated region
    $region6: #{tpu_custom_call.1} parent=1 // pred_check
      _
    $region7: #{tpu_custom_call.1} parent=1 // pred_check_branch
      %13 = sbr.rel (0) target = $region9
    $region8: #{tpu_custom_call.1} parent=1 // pred_region
      _
    $region9: #{tpu_custom_call.1} parent=1 // pred_fallthru
      _
    // Predicated region
    $region10: #{tpu_custom_call.1} parent=1 // pred_check
      _
    $region11: #{tpu_custom_call.1} parent=1 // pred_check_branch
      %15 = sbr.rel (0) target = $region13
    $region12: #{tpu_custom_call.1} parent=1 // pred_region
      _
    $region13: #{tpu_custom_call.1} parent=1 // pred_fallthru
      _
    // Predicated region
    $region14: #{tpu_custom_call.1} parent=1 // pred_check
      _
    $region15: #{tpu_custom_call.1} parent=1 // pred_check_branch
      %17 = sbr.rel (0) target = $region17
    $region16: #{tpu_custom_call.1} parent=1 // pred_region
      _
    $region17: #{tpu_custom_call.1} parent=1 // pred_fallthru
      _
    %v18 = vld [vmem:[%s1] sm:$0xf]
    %v19 = vlaneseq
    %v20 = vand.u32 %v19, 127
    %21 = vset.pattern.permute.xlu0 0
    %22 = vperm.xlu0 %21, %v18
    %v23 = vpop.permute.xlu0 %22
    %vm24 = vcmp.eq.s32.totalorder %v20, %v23
    %v25 = vsel %vm24, 1, 0
    %v26 = vcvt.s32.f32 %v25
    %v27 = vadd.f32 %v26, 0.0
    %v28 = vadd.s32 %v18, 10
    %29 = vset.pattern.permute.xlu0 1
    %30 = vperm.xlu0 %29, %v28
    %v31 = vpop.permute.xlu0 %30
    %vm32 = vcmp.eq.s32.totalorder %v20, %v31
    %v33 = vsel %vm32, 1, 0
    %v34 = vcvt.s32.f32 %v33
    %v35 = vadd.f32 %v27, %v34
    %v36 = vadd.s32 %v18, 20
    %37 = vset.pattern.permute.xlu0 2
    %38 = vperm.xlu0 %37, %v36
    %v39 = vpop.permute.xlu0 %38
    %vm40 = vcmp.eq.s32.totalorder %v20, %v39
    %v41 = vsel %vm40, 1, 0
    %v42 = vcvt.s32.f32 %v41
    %v43 = vadd.f32 %v35, %v42
    %v44 = vadd.s32 %v18, 30
    %45 = vset.pattern.permute.xlu0 3
    %46 = vperm.xlu0 %45, %v44
    %v47 = vpop.permute.xlu0 %46
    %vm48 = vcmp.eq.s32.totalorder %v20, %v47
    %v49 = vsel %vm48, 1, 0
    %v50 = vcvt.s32.f32 %v49
    %v51 = vadd.f32 %v43, %v50
    %v52 = vld [vmem:[%s2] sm:$0xff]
    %v53 = vld [vmem:[%s2 + $0x8] sm:$0xff]
    %v54 = vld [vmem:[%s2 + $0x10] sm:$0xff]
    %v55 = vld [vmem:[%s2 + $0x18] sm:$0xff]
    %v56 = vld [vmem:[%s2 + $0x20] sm:$0xff]
    %vm57 = vcmask 326656
    %v59 = vsel %vm57, %v51, 0
    %61 = vmatprep.subr.mxu0 0.0
    %62 = vmatpush1.msra.mxu0 %v52
    %63 = vmatprep.subr.mxu0 0.0
    %64 = vmatpush1.msra.mxu0 %v53
    %65 = vmatprep.subr.mxu0 0.0
    %66 = vmatpush1.msra.mxu0 %v54
    %67 = vmatprep.subr.mxu0 0.0
    %68 = vmatpush1.msra.mxu0 %v55
    %69 = vmatprep.subr.mxu0 0.0
    %70 = vmatpush1.msra.mxu0 %v56
    %71 = vmatprep.subr.mxu0 0.0
    %72 = vmatpush1.msra.mxu0 0.0
    %73 = vmatprep.subr.mxu0 0.0
    %74 = vmatpush1.msra.mxu0 0.0
    %75 = vmatprep.subr.mxu0 0.0
    %76 = vmatpush1.msra.mxu0 0.0
    %77 = vmatprep.subr.mxu0 0.0
    %78 = vmatpush1.msra.mxu0 0.0
    %79 = vmatprep.subr.mxu0 0.0
    %80 = vmatpush1.msra.mxu0 0.0
    %81 = vmatprep.subr.mxu0 0.0
    %82 = vmatpush1.msra.mxu0 0.0
    %83 = vmatprep.subr.mxu0 0.0
    %84 = vmatpush1.msra.mxu0 0.0
    %85 = vmatprep.subr.mxu0 0.0
    %86 = vmatpush1.msra.mxu0 0.0
    %87 = vmatprep.subr.mxu0 0.0
    %88 = vmatpush1.msra.mxu0 0.0
    %89 = vmatprep.subr.mxu0 0.0
    %90 = vmatpush1.msra.mxu0 0.0
    %91 = vmatprep.subr.mxu0 0.0
    %92 = vmatpush1.msra.mxu0 0.0
    %93 = vmatprep.subr.mxu0 0.0
    %94 = vmatpush1.msra.mxu0 0.0
    %95 = vmatprep.subr.mxu0 0.0
    %96 = vmatpush1.msra.mxu0 0.0
    %97 = vmatprep.subr.mxu0 0.0
    %98 = vmatpush1.msra.mxu0 0.0
    %99 = vmatprep.subr.mxu0 0.0
    %100 = vmatpush1.msra.mxu0 0.0
    %101 = vmatprep.subr.mxu0 0.0
    %102 = vmatpush1.msra.mxu0 0.0
    %103 = vmatprep.subr.mxu0 0.0
    %104 = vmatpush1.msra.mxu0 0.0
    %105 = vmatprep.subr.mxu0 0.0
    %106 = vmatpush1.msra.mxu0 0.0
    %107 = vmatprep.subr.mxu0 0.0
    %108 = vmatpush1.msra.mxu0 0.0
    %109 = vmatprep.subr.mxu0 0.0
    %110 = vmatpush1.msra.mxu0 0.0
    %111 = vmatprep.subr.mxu0 0.0
    %112 = vmatpush1.msra.mxu0 0.0
    %113 = vmatprep.subr.mxu0 0.0
    %114 = vmatpush1.msra.mxu0 0.0
    %115 = vmatprep.subr.mxu0 0.0
    %116 = vmatpush1.msra.mxu0 0.0
    %117 = vmatprep.subr.mxu0 0.0
    %118 = vmatpush1.msra.mxu0 0.0
    %119 = vmatprep.subr.mxu0 0.0
    %120 = vmatpush1.msra.mxu0 0.0
    %121 = vmatprep.subr.mxu0 0.0
    %122 = vmatpush1.msra.mxu0 0.0
    %123 = vmatprep.subr.mxu0 0.0
    %124 = vmatpush1.msra.mxu0 0.0
    %125 = vmatprep.mubr.f32.mxu0 0.0
    %126 = vmatmul.mubr.f32.gmra.mrb[0].mxu0 %v59
    %v127 = vpop.f32.mrb[0].mxu0
    %v128 = vadd.f32 0.0, %v127
    %v129 = vpop.f32.mrb[0].mxu0
    %130 = vdwg.mxu0
    %v131 = vld [vmem:[%s0] sm:$0xf]
    %v132 = vsub.f32 %v131, %v128
    %v133 = vmul.f32 %v132, 0.6931472
    %v134 = vmul.f32 %v133, 1.442695
    %v135 = vpow.pop %v134
    %v136 = vld [vmem:[%s3] sm:$0xff]
    %v137 = vld [vmem:[%s3 + $0x8] sm:$0xff]
    %v138 = vld [vmem:[%s3 + $0x10] sm:$0xff]
    %v139 = vld [vmem:[%s3 + $0x18] sm:$0xff]
    %v140 = vld [vmem:[%s3 + $0x20] sm:$0xff]
    %v141 = vld [vmem:[%s3 + $0x28] sm:$0xff]
    %v142 = vld [vmem:[%s3 + $0x30] sm:$0xff]
    %v143 = vld [vmem:[%s3 + $0x38] sm:$0xff]
    %v144 = vld [vmem:[%s3 + $0x40] sm:$0xff]
    %v145 = vld [vmem:[%s3 + $0x48] sm:$0xff]
    %v146 = vld [vmem:[%s3 + $0x50] sm:$0xff]
    %v147 = vld [vmem:[%s3 + $0x58] sm:$0xff]
    %v148 = vld [vmem:[%s3 + $0x60] sm:$0xff]
    %v149 = vld [vmem:[%s3 + $0x68] sm:$0xff]
    %v150 = vld [vmem:[%s3 + $0x70] sm:$0xff]
    %v151 = vld [vmem:[%s3 + $0x78] sm:$0xff]
    %152 = vmatprep.subr.mxu0 0.0
    %153 = vmatpush1.msra.mxu0 %v136
    %154 = vmatprep.subr.mxu0 0.0
    %155 = vmatpush1.msra.mxu0 %v137
    %156 = vmatprep.subr.mxu0 0.0
    %157 = vmatpush1.msra.mxu0 %v138
    %158 = vmatprep.subr.mxu0 0.0
    %159 = vmatpush1.msra.mxu0 %v139
    %160 = vmatprep.subr.mxu0 0.0
    %161 = vmatpush1.msra.mxu0 %v140
    %162 = vmatprep.subr.mxu0 0.0
    %163 = vmatpush1.msra.mxu0 %v141
    %164 = vmatprep.subr.mxu0 0.0
    %165 = vmatpush1.msra.mxu0 %v142
    %166 = vmatprep.subr.mxu0 0.0
    %167 = vmatpush1.msra.mxu0 %v143
    %168 = vmatprep.subr.mxu0 0.0
    %169 = vmatpush1.msra.mxu0 %v144
    %170 = vmatprep.subr.mxu0 0.0
    %171 = vmatpush1.msra.mxu0 %v145
    %172 = vmatprep.subr.mxu0 0.0
    %173 = vmatpush1.msra.mxu0 %v146
    %174 = vmatprep.subr.mxu0 0.0
    %175 = vmatpush1.msra.mxu0 %v147
    %176 = vmatprep.subr.mxu0 0.0
    %177 = vmatpush1.msra.mxu0 %v148
    %178 = vmatprep.subr.mxu0 0.0
    %179 = vmatpush1.msra.mxu0 %v149
    %180 = vmatprep.subr.mxu0 0.0
    %181 = vmatpush1.msra.mxu0 %v150
    %182 = vmatprep.subr.mxu0 0.0
    %183 = vmatpush1.msra.mxu0 %v151
    %184 = vmatprep.subr.mxu0 0.0
    %185 = vmatpush1.msra.mxu0 0.0
    %186 = vmatprep.subr.mxu0 0.0
    %187 = vmatpush1.msra.mxu0 0.0
    %188 = vmatprep.subr.mxu0 0.0
    %189 = vmatpush1.msra.mxu0 0.0
    %190 = vmatprep.subr.mxu0 0.0
    %191 = vmatpush1.msra.mxu0 0.0
    %192 = vmatprep.subr.mxu0 0.0
    %193 = vmatpush1.msra.mxu0 0.0
    %194 = vmatprep.subr.mxu0 0.0
    %195 = vmatpush1.msra.mxu0 0.0
    %196 = vmatprep.subr.mxu0 0.0
    %197 = vmatpush1.msra.mxu0 0.0
    %198 = vmatprep.subr.mxu0 0.0
    %199 = vmatpush1.msra.mxu0 0.0
    %200 = vmatprep.subr.mxu0 0.0
    %201 = vmatpush1.msra.mxu0 0.0
    %202 = vmatprep.subr.mxu0 0.0
    %203 = vmatpush1.msra.mxu0 0.0
    %204 = vmatprep.subr.mxu0 0.0
    %205 = vmatpush1.msra.mxu0 0.0
    %206 = vmatprep.subr.mxu0 0.0
    %207 = vmatpush1.msra.mxu0 0.0
    %208 = vmatprep.subr.mxu0 0.0
    %209 = vmatpush1.msra.mxu0 0.0
    %210 = vmatprep.subr.mxu0 0.0
    %211 = vmatpush1.msra.mxu0 0.0
    %212 = vmatprep.subr.mxu0 0.0
    %213 = vmatpush1.msra.mxu0 0.0
    %214 = vmatprep.subr.mxu0 0.0
    %215 = vmatpush1.msra.mxu0 0.0
    %216 = vmatprep.mubr.f32.mxu0 0.0
    %217 = vmatmul.mubr.f32.gmra.mrb[0].mxu0 %v135
    %v218 = vpop.f32.mrb[0].mxu0
    %v219 = vadd.f32 0.0, %v218
    %v220 = vpop.f32.mrb[0].mxu0
    %221 = vdwg.mxu0
    %v222 = vrsqrt.pop %v219
    %v223 = vmul.f32 %v219, %v222
    %vm224 = vcmp.eq.f32.partialorder %v219, inf
    %v225 = vsel %vm224, %v219, %v223
    %vm226 = vcmp.eq.f32.partialorder %v219, 0.0
    %v227 = vand.u32 %v219, 2147483648
    %v228 = vsel %vm226, %v227, %v225
    %p229 = scmp.eq.s32.totalorder 0, 0
    // Predicated region
    $region18: #{tpu_custom_call.1} parent=1 // pred_check
      %p230 = pneg %p229
    $region19: #{tpu_custom_call.1} parent=1 // pred_check_branch
      %232 = sbr.rel (%p230) target = $region21
    $region20: #{tpu_custom_call.1} parent=1 // pred_region
      %s233 = smul.u32 0, 4
      %v234 = vlaneseq
      %v235 = vshrl.u32 %v234, 7
      %v236 = vstv %s233
      %v237 = vadd.s32 %v236, %v235
      %v238 = vmul.u32 %v237, 4
      %v239 = vadd.s32 %v238, %v20
      %vm240 = vcmp.lt.s32.totalorder %v239, 16
      %v241 = vsel %vm240, %v228, 0.0
      %vm242 = vcmask 27648
      %v243 = vsel %vm242, %v241, 0.0
      %244 = vadd.xlane.f32.xlu0 %v243
      %v245 = vpop.xlane.xlu0 %244
      %vm246 = vcmask 1043456
      %v247 = vsel %vm246, %v245, 0.0
      %v248 = vrot.slane %v247, 4
      %v249 = vadd.f32 %v247, %v248
      %v250 = vrot.slane %v249, 2
      %v251 = vadd.f32 %v249, %v250
      %v252 = vrot.slane %v251, 1
      %v253 = vadd.f32 %v251, %v252
      %254 = vst [vmem:[#allocation2] sm:$0x1] %v253
    $region21: #{tpu_custom_call.1} parent=1 // pred_fallthru
      _
    %p255 = scmp.ne.s32.totalorder 0, 0
    // Predicated region
    $region22: #{tpu_custom_call.1} parent=1 // pred_check
      %p256 = pneg %p255
    $region23: #{tpu_custom_call.1} parent=1 // pred_check_branch
      %258 = sbr.rel (%p256) target = $region25
    $region24: #{tpu_custom_call.1} parent=1 // pred_region
      %vm259 = vcmask 27648
      %v260 = vsel %vm259, %v228, 0.0
      %261 = vadd.xlane.f32.xlu0 %v260
      %v262 = vpop.xlane.xlu0 %261
      %vm263 = vcmask 1043456
      %v264 = vsel %vm263, %v262, 0.0
      %v265 = vrot.slane %v264, 4
      %v266 = vadd.f32 %v264, %v265
      %v267 = vrot.slane %v266, 2
      %v268 = vadd.f32 %v266, %v267
      %v269 = vrot.slane %v268, 1
      %v270 = vadd.f32 %v268, %v269
      %271 = vst [vmem:[#allocation2] sm:$0x1] %v270
    $region25: #{tpu_custom_call.1} parent=1 // pred_fallthru
      _
    // Predicated region
    $region26: #{tpu_custom_call.1} parent=1 // pred_check
      _
    $region27: #{tpu_custom_call.1} parent=1 // pred_check_branch
      %273 = sbr.rel (0) target = $region29
    $region28: #{tpu_custom_call.1} parent=1 // pred_region
      %s275 = ssub.s32 16, 16
      %276 = vsyncadd [#allocation3], %s275
      %s278 = sshll.u32 [#allocation2], 4
      %s279 = int_to_ptr.vmem [resolvable:$true] %s278
      %281 = dma.vmem_to_hbm [thread:$0]  %s279, 16, %s4, [#allocation3]
    $region29: #{tpu_custom_call.1} parent=1 // pred_fallthru
      _
    // Predicated region
    $region30: #{tpu_custom_call.1} parent=1 // pred_check
      _
    $region31: #{tpu_custom_call.1} parent=1 // pred_check_branch
      %283 = sbr.rel (0) target = $region33
    $region32: #{tpu_custom_call.1} parent=1 // pred_region
      %284 = dma.done [#allocation3], 16
    $region33: #{tpu_custom_call.1} parent=1 // pred_fallthru
      _
    %285 = vsyncpa [#allocation3], 1

</llo_original>
